<compile_context>
chip_gen: v5e
topology: v5e:2x2
jax: 0.10.0
libtpu: 0.0.40
codegen_flags: <defaults>
</compile_context>

<pallas_src>
import functools

import jax
import jax.numpy as jnp
from jax.experimental import pallas as pl
from jax.experimental.pallas import tpu as pltpu


def _vq_kernel(z_ref, hesq_ref, e_ref, zq_ref, idx_ref, err_ref, *maybe_d_ref,
               n_e, want_d):
    # z_ref    : (e_dim, tile_hw)  one batch's channels-major tile of encoder outputs
    # hesq_ref : (n_e, 1)          precomputed 0.5 * ||e_j||^2 (f32)
    # e_ref    : (n_e, e_dim)      full codebook (resident across grid steps)
    d_ref = maybe_d_ref[0] if want_d else None

    zt = z_ref[...]                                # native dtype (f32 or bf16)
    e = e_ref[...]                                 # native dtype
    half_esq = hesq_ref[...]                       # (n_e, 1) f32

    # cross[j, i] = e_j . z_i   (MXU; bf16 inputs stay bf16, f32 accumulate)
    cross = jnp.dot(e, zt, preferred_element_type=jnp.float32)      # (n_e, tile)
    # score = 0.5*(||e_j||^2 - 2 e_j.z_i); the ||z_i||^2 term is constant per
    # column so it does not affect the argmin.
    score = half_esq - cross                                        # (n_e, tile)

    # first-index argmin over the codebook (sublane) axis -> lane-dense (1, tile)
    min_s = jnp.min(score, axis=0, keepdims=True)                   # (1, tile)
    iota = jax.lax.broadcasted_iota(jnp.int32, score.shape, 0)      # (n_e, tile)
    idx = jnp.min(jnp.where(score <= min_s, iota, n_e),
                  axis=0, keepdims=True)                            # (1, tile)

    # codebook gather via one-hot matmul (MXU, no dynamic gather)
    one = jnp.ones((), dtype=e.dtype)
    zero = jnp.zeros((), dtype=e.dtype)
    onehot = jnp.where(iota == idx, one, zero)                      # (n_e, tile)
    zq = jax.lax.dot_general(e, onehot, (((0,), (0,)), ((), ())),
                             preferred_element_type=jnp.float32)    # (e_dim, tile)

    zt_f32 = zt.astype(jnp.float32)
    diff = zq - zt_f32
    zq_ref[...] = zq.astype(zq_ref.dtype)                           # lane-dense store
    idx_ref[...] = idx                                              # lane-dense store
    err_ref[...] = jnp.sum(diff * diff, axis=0, keepdims=True)      # lane-dense store

    if want_d:
        z_sq = jnp.sum(zt_f32 * zt_f32, axis=0, keepdims=True)      # (1, tile)
        # write d already transposed (tile, n_e): wrapper only does a free reshape
        d_ref[...] = jnp.transpose(z_sq + 2.0 * score).astype(d_ref.dtype)


def _vmem_capacity_bytes():
    """Physical per-core VMEM; conservative 64 MiB (v7x) if the query fails."""
    try:
        info = pltpu.get_tpu_info()
        cap = getattr(info, "vmem_capacity_bytes", None)
        if cap:
            return int(cap)
    except Exception:
        pass
    return 64 << 20


def _estimate_vmem(tile, n_e, e_dim, z_bytes, e_bytes, want_d):
    """Rough per-core VMEM requirement for one pipelined grid step."""
    per = 0
    per += 2 * e_dim * tile * z_bytes            # z input block (double-buffered)
    per += 2 * e_dim * tile * z_bytes            # z_q output block (double-buffered)
    per += 2 * 2 * tile * 4                      # idx + err output blocks
    per += n_e * e_dim * e_bytes + 4 * n_e       # codebook + 0.5||e||^2 (single buf)
    per += 4 * n_e * tile * 4                    # cross/score/iota/onehot temps
    per += 3 * e_dim * tile * 4                  # f32 z / zq / diff temps
    if want_d:
        per += 2 * n_e * tile * 4                # d output block (double-buffered)
        per += n_e * tile * 4                    # transposed d temp
    return per


def _pick_tile(hw, batch, n_e, e_dim, z_bytes, e_bytes, want_d, budget):
    hw128 = max(128, ((hw + 127) // 128) * 128)
    cands = []
    if hw128 <= 2048:
        cands.append(hw128)                      # avoids padding when possible
    cands += [2048, 1024, 512, 256]
    tile = 128
    for cand in cands:
        if cand <= hw128 and _estimate_vmem(cand, n_e, e_dim, z_bytes, e_bytes,
                                            want_d) <= budget:
            tile = cand
            break
    # keep at least ~4 grid tiles so v7x's two TensorCores both get work
    while tile > 128 and tile % 256 == 0 and batch * pl.cdiv(hw, tile) < 4:
        tile //= 2
    return tile


def vector_quantizer_forward(z, embedding, beta, *, tile_hw=None,
                             return_distances=True):
    """Pallas implementation of VectorQuantizer.forward (forward values only).

    z         : (B, C, H, W), C == e_dim
    embedding : (n_e, e_dim) codebook
    returns (z_q [B,C,H,W], loss scalar,
             (None, None, min_encoding_indices [B*H*W], d [B*H*W, n_e] or None))
    """
    B, C, H, W = z.shape
    n_e, e_dim = embedding.shape
    assert C == e_dim, "channel dim must equal embedding dim"
    hw = H * W
    want_d = bool(return_distances)

    z_bytes = z.dtype.itemsize
    e_bytes = embedding.dtype.itemsize

    cap = _vmem_capacity_bytes()
    budget = max(cap * 3 // 4, 32 << 20)         # ~48 MiB v7x, ~96 MiB v5e/v6e

    if tile_hw is None:
        tile_hw = _pick_tile(hw, B, n_e, e_dim, z_bytes, e_bytes, want_d, budget)
    assert tile_hw % 128 == 0, "tile_hw must be a multiple of 128 (lane width)"

    num_tiles = pl.cdiv(hw, tile_hw)
    hw_pad = num_tiles * tile_hw

    # free reshape: NCHW is already contiguous as (B, C, H*W) — no HBM transpose
    z3 = z.reshape(B, e_dim, hw)
    if hw_pad != hw:
        z3 = jnp.pad(z3, ((0, 0), (0, 0), (0, hw_pad - hw)))

    # hoisted: 0.5 * ||e_j||^2 once, in f32 (codebook itself stays native dtype)
    emb_f32 = embedding.astype(jnp.float32)
    half_esq = 0.5 * jnp.sum(emb_f32 * emb_f32, axis=1, keepdims=True)   # (n_e, 1)

    kernel = functools.partial(_vq_kernel, n_e=n_e, want_d=want_d)

    # constant-index inputs: single-buffer them when the codebook is big enough
    # that halving its VMEM footprint actually buys tile width.
    big_codebook = n_e * e_dim * e_bytes >= (1 << 20)

    def _const_spec(shape):
        idx_map = lambda b, i: (0, 0)
        if big_codebook:
            try:
                return pl.BlockSpec(shape, idx_map, pipeline_mode=pl.Buffered(1))
            except Exception:
                pass
        return pl.BlockSpec(shape, idx_map)

    in_specs = [
        pl.BlockSpec((None, e_dim, tile_hw), lambda b, i: (b, 0, i)),  # z (native)
        _const_spec((n_e, 1)),                                         # 0.5||e||^2
        _const_spec((n_e, e_dim)),                                     # codebook
    ]
    out_shape = [
        jax.ShapeDtypeStruct((B, e_dim, hw_pad), z.dtype),    # z_q (NCHW-native)
        jax.ShapeDtypeStruct((B, 1, hw_pad), jnp.int32),      # argmin indices
        jax.ShapeDtypeStruct((B, 1, hw_pad), jnp.float32),    # per-position ||zq-z||^2
    ]
    out_specs = [
        pl.BlockSpec((None, e_dim, tile_hw), lambda b, i: (b, 0, i)),
        pl.BlockSpec((None, 1, tile_hw), lambda b, i: (b, 0, i)),
        pl.BlockSpec((None, 1, tile_hw), lambda b, i: (b, 0, i)),
    ]
    if want_d:
        out_shape.append(jax.ShapeDtypeStruct((B, hw_pad, n_e), jnp.float32))
        out_specs.append(pl.BlockSpec((None, tile_hw, n_e), lambda b, i: (b, i, 0)))

    est = _estimate_vmem(tile_hw, n_e, e_dim, z_bytes, e_bytes, want_d)
    vmem_limit = int(min(budget, max(2 * est + (4 << 20), 32 << 20)))

    outs = pl.pallas_call(
        kernel,
        out_shape=tuple(out_shape),
        grid_spec=pltpu.PrefetchScalarGridSpec(
            num_scalar_prefetch=0,
            grid=(B, num_tiles),
            in_specs=in_specs,
            out_specs=out_specs,
        ),
        compiler_params=pltpu.CompilerParams(
            dimension_semantics=("parallel", "parallel"),
            vmem_limit_bytes=vmem_limit,
        ),
    )(z3, half_esq, embedding)

    if want_d:
        zq3, idx3, err3, d3 = outs
        d = d3[:, :hw, :].reshape(B * hw, n_e)     # (N, n_e), rows in (b,h,w) order
    else:
        zq3, idx3, err3 = outs
        d = None

    # straight-through forward value is exactly z_q; NCHW-native -> free reshape
    z_q = zq3[:, :, :hw].reshape(B, C, H, W)
    min_encoding_indices = idx3[:, 0, :hw].reshape(-1)

    # loss = mean((sg[z_q]-z)^2) + beta*mean((z_q-sg[z])^2) -> forward = (1+beta)*MSE
    err_valid = err3[:, 0, :hw]
    loss = ((1.0 + beta) * jnp.sum(err_valid)
            / jnp.float32(B * hw * e_dim)).astype(jnp.float32)

    return z_q, loss, (None, None, min_encoding_indices, d)


def _reference_forward(z, embedding, beta):
    """Pure-JAX reference mirroring the PyTorch module (forward values)."""
    B, C, H, W = z.shape
    z_nhwc = jnp.transpose(z, (0, 2, 3, 1))
    z_flat = z_nhwc.reshape(-1, C).astype(jnp.float32)
    e = embedding.astype(jnp.float32)
    d = (jnp.sum(z_flat ** 2, axis=1, keepdims=True)
         + jnp.sum(e ** 2, axis=1)
         - 2.0 * z_flat @ e.T)
    idx = jnp.argmin(d, axis=1)
    z_q = e[idx].reshape(z_nhwc.shape)
    loss = jnp.mean((z_q - z_nhwc) ** 2) + beta * jnp.mean((z_q - z_nhwc) ** 2)
    z_q = jnp.transpose(z_q, (0, 3, 1, 2))
    return z_q, loss, idx, d


if __name__ == "__main__":
    n_e, e_dim, beta = 128, 4, 0.25

    key = jax.random.PRNGKey(0)
    k_z, k_e, k_z2 = jax.random.split(key, 3)

    # embedding.weight ~ U(-1/n_e, 1/n_e), deterministic
    embedding = jax.random.uniform(
        k_e, (n_e, e_dim), dtype=jnp.float32, minval=-1.0 / n_e, maxval=1.0 / n_e)

    # case 1: B=2, C=4, H=W=16  (H*W is lane-aligned: no padding path)
    z = jax.random.normal(k_z, (2, e_dim, 16, 16), dtype=jnp.float32)
    z_q, loss, (_, _, indices, d) = jax.block_until_ready(
        vector_quantizer_forward(z, embedding, beta, return_distances=True))
    z_q_ref, loss_ref, idx_ref, d_ref = _reference_forward(z, embedding, beta)
    assert jnp.allclose(z_q, z_q_ref, atol=1e-5, rtol=1e-5)
    assert jnp.allclose(loss, loss_ref, atol=1e-5, rtol=1e-5)
    assert jnp.allclose(d, d_ref, atol=1e-4, rtol=1e-4)
    assert jnp.all(indices == idx_ref.astype(jnp.int32))

    # fast path: distance matrix not materialized
    z_q2, loss2, (_, _, indices2, d_none) = jax.block_until_ready(
        vector_quantizer_forward(z, embedding, beta, return_distances=False))
    assert d_none is None
    assert jnp.allclose(z_q2, z_q_ref, atol=1e-5, rtol=1e-5)
    assert jnp.allclose(loss2, loss_ref, atol=1e-5, rtol=1e-5)
    assert jnp.all(indices2 == idx_ref.astype(jnp.int32))

    # case 2: H*W = 100  (exercises lane-padding + valid-slice path)
    z_odd = jax.random.normal(k_z2, (2, e_dim, 10, 10), dtype=jnp.float32)
    z_q3, loss3, (_, _, indices3, d3) = jax.block_until_ready(
        vector_quantizer_forward(z_odd, embedding, beta, return_distances=True))
    z_q_ref3, loss_ref3, idx_ref3, d_ref3 = _reference_forward(z_odd, embedding, beta)
    assert jnp.allclose(z_q3, z_q_ref3, atol=1e-5, rtol=1e-5)
    assert jnp.allclose(loss3, loss_ref3, atol=1e-5, rtol=1e-5)
    assert jnp.allclose(d3, d_ref3, atol=1e-4, rtol=1e-4)
    assert jnp.all(indices3 == idx_ref3.astype(jnp.int32))

    print("KERNEL_OK")
</pallas_src>

<mosaic_0001>
module attributes {stable_mosaic.version = 11 : i64} {
  func.func @_vq_kernel(%arg0: i32, %arg1: i32, %arg2: memref<1x4x128xf32, #tpu.memory_space<vmem>>, %arg3: memref<128x1xf32, #tpu.memory_space<vmem>>, %arg4: memref<128x4xf32, #tpu.memory_space<vmem>>, %arg5: memref<1x4x128xf32, #tpu.memory_space<vmem>>, %arg6: memref<1x1x128xi32, #tpu.memory_space<vmem>>, %arg7: memref<1x1x128xf32, #tpu.memory_space<vmem>>, %arg8: memref<1x128x128xf32, #tpu.memory_space<vmem>>) attributes {dimension_semantics = [#tpu.dimension_semantics<parallel>, #tpu.dimension_semantics<parallel>], iteration_bounds = array<i64: 2, 2>, scalar_prefetch = 0 : i64, scratch_operands = 0 : i64, tpu.core_type = #tpu.core_type<tc>, window_params = [{transform_indices = @transform_0, window_bounds = array<i64: 1, 4, 128>}, {pipeline_mode = #tpu.pipeline_mode<synchronous>, transform_indices = @transform_1, window_bounds = array<i64: 128, 1>}, {pipeline_mode = #tpu.pipeline_mode<synchronous>, transform_indices = @transform_2, window_bounds = array<i64: 128, 4>}, {transform_indices = @transform_3, window_bounds = array<i64: 1, 4, 128>}, {transform_indices = @transform_4, window_bounds = array<i64: 1, 1, 128>}, {transform_indices = @transform_5, window_bounds = array<i64: 1, 1, 128>}, {transform_indices = @transform_6, window_bounds = array<i64: 1, 128, 128>}]} {
    %c0 = arith.constant 0 : index
    %c0_0 = arith.constant 0 : index
    %c0_1 = arith.constant 0 : index
    %0 = vector.load %arg2[%c0, %c0_0, %c0_1] : memref<1x4x128xf32, #tpu.memory_space<vmem>>, vector<1x4x128xf32>
    %1 = vector.shape_cast %0 : vector<1x4x128xf32> to vector<4x128xf32>
    %c0_2 = arith.constant 0 : index
    %c0_3 = arith.constant 0 : index
    %2 = vector.load %arg4[%c0_2, %c0_3] : memref<128x4xf32, #tpu.memory_space<vmem>>, vector<128x4xf32>
    %c0_4 = arith.constant 0 : index
    %c0_5 = arith.constant 0 : index
    %3 = vector.load %arg3[%c0_4, %c0_5] : memref<128x1xf32, #tpu.memory_space<vmem>>, vector<128x1xf32>
    %cst = arith.constant dense<0.000000e+00> : vector<128x128xf32>
    %4 = tpu.matmul %2, %1, %cst {dimension_numbers = #tpu.dot_dimension_numbers<[1], [0], [0], [1], [0, 0, 1, 1], [], []>} : vector<128x4xf32>, vector<4x128xf32>, vector<128x128xf32> -> vector<128x128xf32>
    %5 = vector.broadcast %3 : vector<128x1xf32> to vector<128x128xf32>
    %6 = arith.subf %5, %4 : vector<128x128xf32>
    %cst_6 = arith.constant dense<0x7F800000> : vector<128xf32>
    %7 = vector.multi_reduction <minimumf>, %6, %cst_6 [0] : vector<128x128xf32> to vector<128xf32>
    %8 = vector.shape_cast %7 : vector<128xf32> to vector<1x128xf32>
    %9 = tpu.iota {dimensions = array<i32: 0>} : vector<128x128xi32>
    %10 = vector.broadcast %8 : vector<1x128xf32> to vector<128x128xf32>
    %11 = arith.cmpf ole, %6, %10 : vector<128x128xf32>
    %c128_i32 = arith.constant 128 : i32
    %12 = vector.broadcast %c128_i32 : i32 to vector<128x128xi32>
    %13 = arith.select %11, %9, %12 : vector<128x128xi1>, vector<128x128xi32>
    %cst_7 = arith.constant dense<2147483647> : vector<128xi32>
    %14 = vector.multi_reduction <minsi>, %13, %cst_7 [0] : vector<128x128xi32> to vector<128xi32>
    %15 = vector.shape_cast %14 : vector<128xi32> to vector<1x128xi32>
    %16 = vector.broadcast %15 : vector<1x128xi32> to vector<128x128xi32>
    %17 = arith.cmpi eq, %9, %16 : vector<128x128xi32>
    %cst_8 = arith.constant 1.000000e+00 : f32
    %cst_9 = arith.constant 0.000000e+00 : f32
    %18 = vector.broadcast %cst_8 : f32 to vector<128x128xf32>
    %19 = vector.broadcast %cst_9 : f32 to vector<128x128xf32>
    %20 = arith.select %17, %18, %19 : vector<128x128xi1>, vector<128x128xf32>
    %cst_10 = arith.constant dense<0.000000e+00> : vector<4x128xf32>
    %21 = tpu.matmul %2, %20, %cst_10 {dimension_numbers = #tpu.dot_dimension_numbers<[0], [0], [1], [1], [0, 1, 1, 1], [], []>} : vector<128x4xf32>, vector<128x128xf32>, vector<4x128xf32> -> vector<4x128xf32>
    %22 = arith.subf %21, %1 : vector<4x128xf32>
    %c0_11 = arith.constant 0 : index
    %c0_12 = arith.constant 0 : index
    %c0_13 = arith.constant 0 : index
    %23 = vector.load %arg5[%c0_11, %c0_12, %c0_13] : memref<1x4x128xf32, #tpu.memory_space<vmem>>, vector<1x4x128xf32>
    %24 = vector.shape_cast %23 : vector<1x4x128xf32> to vector<4x128xf32>
    %25 = vector.shape_cast %21 : vector<4x128xf32> to vector<1x4x128xf32>
    tpu.vector_store %arg5[%c0_11, %c0_12, %c0_13], %25 {strides = array<i32>} : memref<1x4x128xf32, #tpu.memory_space<vmem>>, vector<1x4x128xf32>,
    %c0_14 = arith.constant 0 : index
    %c0_15 = arith.constant 0 : index
    %c0_16 = arith.constant 0 : index
    %26 = vector.load %arg6[%c0_14, %c0_15, %c0_16] : memref<1x1x128xi32, #tpu.memory_space<vmem>>, vector<1x1x128xi32>
    %27 = vector.shape_cast %26 : vector<1x1x128xi32> to vector<1x128xi32>
    %28 = vector.shape_cast %15 : vector<1x128xi32> to vector<1x1x128xi32>
    tpu.vector_store %arg6[%c0_14, %c0_15, %c0_16], %28 {strides = array<i32>} : memref<1x1x128xi32, #tpu.memory_space<vmem>>, vector<1x1x128xi32>,
    %29 = arith.mulf %22, %22 : vector<4x128xf32>
    %cst_17 = arith.constant dense<0.000000e+00> : vector<128xf32>
    %30 = vector.multi_reduction <add>, %29, %cst_17 [0] : vector<4x128xf32> to vector<128xf32>
    %31 = vector.shape_cast %30 : vector<128xf32> to vector<1x128xf32>
    %c0_18 = arith.constant 0 : index
    %c0_19 = arith.constant 0 : index
    %c0_20 = arith.constant 0 : index
    %32 = vector.load %arg7[%c0_18, %c0_19, %c0_20] : memref<1x1x128xf32, #tpu.memory_space<vmem>>, vector<1x1x128xf32>
    %33 = vector.shape_cast %32 : vector<1x1x128xf32> to vector<1x128xf32>
    %34 = vector.shape_cast %31 : vector<1x128xf32> to vector<1x1x128xf32>
    tpu.vector_store %arg7[%c0_18, %c0_19, %c0_20], %34 {strides = array<i32>} : memref<1x1x128xf32, #tpu.memory_space<vmem>>, vector<1x1x128xf32>,
    %35 = arith.mulf %1, %1 : vector<4x128xf32>
    %cst_21 = arith.constant dense<0.000000e+00> : vector<128xf32>
    %36 = vector.multi_reduction <add>, %35, %cst_21 [0] : vector<4x128xf32> to vector<128xf32>
    %37 = vector.shape_cast %36 : vector<128xf32> to vector<1x128xf32>
    %cst_22 = arith.constant 2.000000e+00 : f32
    %38 = vector.broadcast %cst_22 : f32 to vector<128x128xf32>
    %39 = arith.mulf %38, %6 : vector<128x128xf32>
    %40 = vector.broadcast %37 : vector<1x128xf32> to vector<128x128xf32>
    %41 = arith.addf %40, %39 : vector<128x128xf32>
    %42 = tpu.transpose %41, [1, 0] : vector<128x128xf32> -> vector<128x128xf32>
    %c0_23 = arith.constant 0 : index
    %c0_24 = arith.constant 0 : index
    %c0_25 = arith.constant 0 : index
    %43 = vector.load %arg8[%c0_23, %c0_24, %c0_25] : memref<1x128x128xf32, #tpu.memory_space<vmem>>, vector<1x128x128xf32>
    %44 = vector.shape_cast %43 : vector<1x128x128xf32> to vector<128x128xf32>
    %45 = vector.shape_cast %42 : vector<128x128xf32> to vector<1x128x128xf32>
    tpu.vector_store %arg8[%c0_23, %c0_24, %c0_25], %45 {strides = array<i32>} : memref<1x128x128xf32, #tpu.memory_space<vmem>>, vector<1x128x128xf32>,
    return
  }
  func.func @transform_0(%arg0: i32, %arg1: i32) -> (i32, i32, i32) {
    %c0_i32 = arith.constant 0 : i32
    %c0_i32_0 = arith.constant 0 : i32
    return %arg0, %c0_i32, %arg1 : i32, i32, i32
  }
  func.func @transform_1(%arg0: i32, %arg1: i32) -> (i32, i32) {
    %c0_i32 = arith.constant 0 : i32
    %c0_i32_0 = arith.constant 0 : i32
    %c0_i32_1 = arith.constant 0 : i32
    return %c0_i32, %c0_i32_0 : i32, i32
  }
  func.func @transform_2(%arg0: i32, %arg1: i32) -> (i32, i32) {
    %c0_i32 = arith.constant 0 : i32
    %c0_i32_0 = arith.constant 0 : i32
    %c0_i32_1 = arith.constant 0 : i32
    return %c0_i32, %c0_i32_0 : i32, i32
  }
  func.func @transform_3(%arg0: i32, %arg1: i32) -> (i32, i32, i32) {
    %c0_i32 = arith.constant 0 : i32
    %c0_i32_0 = arith.constant 0 : i32
    return %arg0, %c0_i32, %arg1 : i32, i32, i32
  }
  func.func @transform_4(%arg0: i32, %arg1: i32) -> (i32, i32, i32) {
    %c0_i32 = arith.constant 0 : i32
    %c0_i32_0 = arith.constant 0 : i32
    return %arg0, %c0_i32, %arg1 : i32, i32, i32
  }
  func.func @transform_5(%arg0: i32, %arg1: i32) -> (i32, i32, i32) {
    %c0_i32 = arith.constant 0 : i32
    %c0_i32_0 = arith.constant 0 : i32
    return %arg0, %c0_i32, %arg1 : i32, i32, i32
  }
  func.func @transform_6(%arg0: i32, %arg1: i32) -> (i32, i32, i32) {
    %c0_i32 = arith.constant 0 : i32
    %c0_i32_0 = arith.constant 0 : i32
    return %arg0, %arg1, %c0_i32 : i32, i32, i32
  }
}

</mosaic_0001>

<llo_original>
// kernel: tpu_custom_call.1
$region0: #{tpu_custom_call.1}
  #allocation0 [shape = 'u32[]', space=smem, size = 0x4, offset = 0x4, fixed_abs, tag = 'smem constant byte address 0x4 - core index']
  #allocation1 [shape = 'u32[72,128]{1,0:T(1,128)}', space=vmem, size = 0x9000, scoped, tag = 'internal scratch']
  %s0 = inlined_call_operand.vmem [shape: f32[2,4,256], index: 0, kind: input, shape index: {}]
  %s1 = inlined_call_operand.vmem [shape: f32[128,1], index: 1, kind: input, shape index: {}]
  %s2 = inlined_call_operand.vmem [shape: f32[128,4], index: 2, kind: input, shape index: {}]
  %s3 = inlined_call_operand.hbm [shape: f32[2,4,256], index: 3, kind: output, shape index: {0}]
  %s4 = inlined_call_operand.hbm [shape: s32[2,1,256], index: 4, kind: output, shape index: {1}]
  %s5 = inlined_call_operand.hbm [shape: f32[2,1,256], index: 5, kind: output, shape index: {2}]
  %s6 = inlined_call_operand.hbm [shape: f32[2,256,128], index: 6, kind: output, shape index: {3}]
  %7 = xla_tuple %s3, %s4, %s5, %s6
  %s8 = sld [smem:[#allocation0]]
  $region69: #{tpu_custom_call.1} parent=0
    _
  %s10 = ssub.s32 1, %s8
  %s11 = scalar_select 0, %s10, %s8
  $region1: #{tpu_custom_call.1} parent=0
    #allocation2 [shape = 'u8[4096]{0}', space=vmem, size = 0x1000, scoped, tag = 'output window, operand 0']
    #allocation3 [shape = 's32[2]{0}', space=sflag, size = 0x8, scoped, tag = 'scoped memory for tpu_custom_call.1']
    #allocation4 [shape = 'u8[1024]{0}', space=vmem, size = 0x400, scoped, tag = 'output window, operand 1']
    #allocation5 [shape = 's32[2]{0}', space=sflag, size = 0x8, scoped, tag = 'scoped memory for tpu_custom_call.1']
    #allocation6 [shape = 'u8[1024]{0}', space=vmem, size = 0x400, scoped, tag = 'output window, operand 2']
    #allocation7 [shape = 'u8[131072]{0}', space=vmem, size = 0x20000, scoped, tag = 'output window, operand 3']
    #allocation8 [shape = 's32[2]{0}', space=sflag, size = 0x8, scoped, tag = 'scoped memory for tpu_custom_call.1']
    %12 = vsyncpa [#allocation3], 0
    %s13 = scalar_lea.sflag [#allocation3], 1
    %14 = vsyncpa %s13, 0
    %15 = vsyncpa [#allocation5], 0
    %s16 = scalar_lea.sflag [#allocation5], 1
    %17 = vsyncpa %s16, 0
    %18 = vsyncpa [#allocation8], 0
    %s19 = scalar_lea.sflag [#allocation8], 1
    %20 = vsyncpa %s19, 0
    loop: start=0, step=1, limit=6
    $region2: #{tpu_custom_call.1} parent=1 // loop_pre_header
      _
    $region3: #{tpu_custom_call.1} parent=1 // loop_header
      %s22 = sphi 0, %s26
      %p23 = scmp.ge.s32.totalorder %s22, 6
      %s29 = sphi 0, %s41
      %s30 = sphi 0, %s37
      %s31 = sphi 0, %s29
      %s32 = sphi 0, %s30
      %s33 = sphi 0, %s31
      %s34 = sphi 0, %s32
      %s46 = sphi 0, %s48
      %s49 = sphi 0, %s46
      %s50 = sphi 0, %s49
      %s66 = sphi 0, %s50
      %s70 = sphi 0, %s70
      %s72 = sphi 0, %s70
      %s73 = sphi 0, %s72
      %s87 = sphi 0, %s73
      %s91 = sphi 0, %s91
      %s93 = sphi 0, %s91
      %s94 = sphi 0, %s93
      %s108 = sphi 0, %s94
      %s116 = sphi 0, %s118
      %s119 = sphi 0, %s116
      %s120 = sphi 0, %s119
      %s136 = sphi 0, %s120
      %s144 = sphi 0, %s146
      %s147 = sphi 0, %s144
      %s148 = sphi 0, %s147
      %s164 = sphi 0, %s148
      %s172 = sphi 0, %s174
      %s175 = sphi 0, %s172
      %s176 = sphi 0, %s175
      %s192 = sphi 0, %s176
      %s200 = sphi 0, %s202
      %s203 = sphi 0, %s200
      %s204 = sphi 0, %s203
      %s220 = sphi 0, %s204
    $region4: #{tpu_custom_call.1} parent=1 // loop_header_branch
      %25 = sbr.rel (%p23) target = $region8
    $region5: #{tpu_custom_call.1} parent=1 // loop_body
      %s27 = ssub.s32 %s22, 1
      %s28 = ssub.s32 %s22, 2
      %s35 = sadd.s32 1, %s30
      %p36 = scmp.ge.s32.totalorder %s35, 2
      %s37 = scalar_select %p36, 0, %s35
      %s38 = sadd.s32 1, %s29
      %s39 = scalar_select %p36, %s38, %s29
      %p40 = scmp.ge.s32.totalorder %s39, 2
      %s41 = scalar_select %p40, 0, %s39
      %s42 = ssub.s32 %s29, %s41
      %s43 = ssub.s32 %s30, %s37
      %s44 = sor.u32 %s42, %s43
      %p45 = scmp.eq.s32.totalorder %s44, 0
      %s47 = sadd.s32 %s46, 1
      %s48 = scalar_select %p45, %s46, %s47
      %p51 = pneg %p45
      %p52 = scmp.eq.s32.totalorder %s22, 3
      %p53 = por %p51, %p52
      %p54 = scmp.ne.s32.totalorder %s46, %s49
      %p55 = scmp.eq.s32.totalorder %s22, 0
      %p56 = por %p54, %p55
      %p57 = scmp.ne.s32.totalorder %s46, %s49
      %p58 = scmp.eq.s32.totalorder %s27, 3
      %p59 = por %p57, %p58
      %p60 = scmp.ne.s32.totalorder %s49, %s50
      %p61 = scmp.eq.s32.totalorder %s27, 0
      %p62 = por %p60, %p61
      %p63 = scmp.ne.s32.totalorder %s49, %s50
      %p64 = scmp.eq.s32.totalorder %s28, 3
      %p65 = por %p63, %p64
      %p67 = scmp.ne.s32.totalorder %s50, %s66
      %p68 = scmp.eq.s32.totalorder %s28, 0
      %p69 = por %p67, %p68
      %s71 = sadd.s32 %s70, 1
      %p74 = scmp.eq.s32.totalorder %s22, 3
      %p75 = scmp.ne.s32.totalorder %s70, %s72
      %p76 = scmp.eq.s32.totalorder %s22, 0
      %p77 = por %p75, %p76
      %p78 = scmp.ne.s32.totalorder %s70, %s72
      %p79 = scmp.eq.s32.totalorder %s27, 3
      %p80 = por %p78, %p79
      %p81 = scmp.ne.s32.totalorder %s72, %s73
      %p82 = scmp.eq.s32.totalorder %s27, 0
      %p83 = por %p81, %p82
      %p84 = scmp.ne.s32.totalorder %s72, %s73
      %p85 = scmp.eq.s32.totalorder %s28, 3
      %p86 = por %p84, %p85
      %p88 = scmp.ne.s32.totalorder %s73, %s87
      %p89 = scmp.eq.s32.totalorder %s28, 0
      %p90 = por %p88, %p89
      %s92 = sadd.s32 %s91, 1
      %p95 = scmp.eq.s32.totalorder %s22, 3
      %p96 = scmp.ne.s32.totalorder %s91, %s93
      %p97 = scmp.eq.s32.totalorder %s22, 0
      %p98 = por %p96, %p97
      %p99 = scmp.ne.s32.totalorder %s91, %s93
      %p100 = scmp.eq.s32.totalorder %s27, 3
      %p101 = por %p99, %p100
      %p102 = scmp.ne.s32.totalorder %s93, %s94
      %p103 = scmp.eq.s32.totalorder %s27, 0
      %p104 = por %p102, %p103
      %p105 = scmp.ne.s32.totalorder %s93, %s94
      %p106 = scmp.eq.s32.totalorder %s28, 3
      %p107 = por %p105, %p106
      %p109 = scmp.ne.s32.totalorder %s94, %s108
      %p110 = scmp.eq.s32.totalorder %s28, 0
      %p111 = por %p109, %p110
      %s112 = ssub.s32 %s29, %s41
      %s113 = ssub.s32 %s30, %s37
      %s114 = sor.u32 %s112, %s113
      %p115 = scmp.eq.s32.totalorder %s114, 0
      %s117 = sadd.s32 %s116, 1
      %s118 = scalar_select %p115, %s116, %s117
      %p121 = pneg %p115
      %p122 = scmp.eq.s32.totalorder %s22, 3
      %p123 = por %p121, %p122
      %p124 = scmp.ne.s32.totalorder %s116, %s119
      %p125 = scmp.eq.s32.totalorder %s22, 0
      %p126 = por %p124, %p125
      %p127 = scmp.ne.s32.totalorder %s116, %s119
      %p128 = scmp.eq.s32.totalorder %s27, 3
      %p129 = por %p127, %p128
      %p130 = scmp.ne.s32.totalorder %s119, %s120
      %p131 = scmp.eq.s32.totalorder %s27, 0
      %p132 = por %p130, %p131
      %p133 = scmp.ne.s32.totalorder %s119, %s120
      %p134 = scmp.eq.s32.totalorder %s28, 3
      %p135 = por %p133, %p134
      %p137 = scmp.ne.s32.totalorder %s120, %s136
      %p138 = scmp.eq.s32.totalorder %s28, 0
      %p139 = por %p137, %p138
      %s140 = ssub.s32 %s29, %s41
      %s141 = ssub.s32 %s30, %s37
      %s142 = sor.u32 %s140, %s141
      %p143 = scmp.eq.s32.totalorder %s142, 0
      %s145 = sadd.s32 %s144, 1
      %s146 = scalar_select %p143, %s144, %s145
      %p149 = pneg %p143
      %p150 = scmp.eq.s32.totalorder %s22, 3
      %p151 = por %p149, %p150
      %p152 = scmp.ne.s32.totalorder %s144, %s147
      %p153 = scmp.eq.s32.totalorder %s22, 0
      %p154 = por %p152, %p153
      %p155 = scmp.ne.s32.totalorder %s144, %s147
      %p156 = scmp.eq.s32.totalorder %s27, 3
      %p157 = por %p155, %p156
      %p158 = scmp.ne.s32.totalorder %s147, %s148
      %p159 = scmp.eq.s32.totalorder %s27, 0
      %p160 = por %p158, %p159
      %p161 = scmp.ne.s32.totalorder %s147, %s148
      %p162 = scmp.eq.s32.totalorder %s28, 3
      %p163 = por %p161, %p162
      %p165 = scmp.ne.s32.totalorder %s148, %s164
      %p166 = scmp.eq.s32.totalorder %s28, 0
      %p167 = por %p165, %p166
      %s168 = ssub.s32 %s29, %s41
      %s169 = ssub.s32 %s30, %s37
      %s170 = sor.u32 %s168, %s169
      %p171 = scmp.eq.s32.totalorder %s170, 0
      %s173 = sadd.s32 %s172, 1
      %s174 = scalar_select %p171, %s172, %s173
      %p177 = pneg %p171
      %p178 = scmp.eq.s32.totalorder %s22, 3
      %p179 = por %p177, %p178
      %p180 = scmp.ne.s32.totalorder %s172, %s175
      %p181 = scmp.eq.s32.totalorder %s22, 0
      %p182 = por %p180, %p181
      %p183 = scmp.ne.s32.totalorder %s172, %s175
      %p184 = scmp.eq.s32.totalorder %s27, 3
      %p185 = por %p183, %p184
      %p186 = scmp.ne.s32.totalorder %s175, %s176
      %p187 = scmp.eq.s32.totalorder %s27, 0
      %p188 = por %p186, %p187
      %p189 = scmp.ne.s32.totalorder %s175, %s176
      %p190 = scmp.eq.s32.totalorder %s28, 3
      %p191 = por %p189, %p190
      %p193 = scmp.ne.s32.totalorder %s176, %s192
      %p194 = scmp.eq.s32.totalorder %s28, 0
      %p195 = por %p193, %p194
      %s196 = ssub.s32 %s29, %s41
      %s197 = ssub.s32 %s30, %s37
      %s198 = sor.u32 %s196, %s197
      %p199 = scmp.eq.s32.totalorder %s198, 0
      %s201 = sadd.s32 %s200, 1
      %s202 = scalar_select %p199, %s200, %s201
      %p205 = pneg %p199
      %p206 = scmp.eq.s32.totalorder %s22, 3
      %p207 = por %p205, %p206
      %p208 = scmp.ne.s32.totalorder %s200, %s203
      %p209 = scmp.eq.s32.totalorder %s22, 0
      %p210 = por %p208, %p209
      %p211 = scmp.ne.s32.totalorder %s200, %s203
      %p212 = scmp.eq.s32.totalorder %s27, 3
      %p213 = por %p211, %p212
      %p214 = scmp.ne.s32.totalorder %s203, %s204
      %p215 = scmp.eq.s32.totalorder %s27, 0
      %p216 = por %p214, %p215
      %p217 = scmp.ne.s32.totalorder %s203, %s204
      %p218 = scmp.eq.s32.totalorder %s28, 3
      %p219 = por %p217, %p218
      %p221 = scmp.ne.s32.totalorder %s204, %s220
      %p222 = scmp.eq.s32.totalorder %s28, 0
      %p223 = por %p221, %p222
      %p224 = scmp.le.s32.totalorder 1, %s22
      %p225 = scmp.lt.s32.totalorder %s22, 5
      %p226 = pnand %p224, %p225
      %p227 = pneg %p226
      // Predicated region
      $region9: #{tpu_custom_call.1} parent=5 // pred_check
        _
      $region10: #{tpu_custom_call.1} parent=5 // pred_check_branch
        %229 = sbr.rel (%p226) target = $region12
      $region11: #{tpu_custom_call.1} parent=5 // pred_region
        %s230 = ssub.s32 %s22, 1
        // Predicated region
        $region13: #{tpu_custom_call.1} parent=11 // pred_check
          %p231 = pneg %p83
        $region14: #{tpu_custom_call.1} parent=11 // pred_check_branch
          %233 = sbr.rel (%p231) target = $region16
        $region15: #{tpu_custom_call.1} parent=11 // pred_region
          _
        $region16: #{tpu_custom_call.1} parent=11 // pred_fallthru
          _
        // Predicated region
        $region17: #{tpu_custom_call.1} parent=11 // pred_check
          %p234 = pneg %p104
        $region18: #{tpu_custom_call.1} parent=11 // pred_check_branch
          %236 = sbr.rel (%p234) target = $region20
        $region19: #{tpu_custom_call.1} parent=11 // pred_region
          _
        $region20: #{tpu_custom_call.1} parent=11 // pred_fallthru
          _
      $region12: #{tpu_custom_call.1} parent=5 // pred_fallthru
        _
      %p237 = scmp.lt.s32.totalorder %s22, 4
      // Predicated region
      $region21: #{tpu_custom_call.1} parent=5 // pred_check
        %p238 = pneg %p237
      $region22: #{tpu_custom_call.1} parent=5 // pred_check_branch
        %240 = sbr.rel (%p238) target = $region24
      $region23: #{tpu_custom_call.1} parent=5 // pred_region
        // Predicated region
        $region25: #{tpu_custom_call.1} parent=23 // pred_check
          %p241 = pneg %p56
        $region26: #{tpu_custom_call.1} parent=23 // pred_check_branch
          %243 = sbr.rel (%p241) target = $region28
        $region27: #{tpu_custom_call.1} parent=23 // pred_region
          %p244 = scmp.lt.s32.totalorder %s29, 1
          %s245 = scalar_select %p244, %s29, 1
          %p246 = scmp.lt.s32.totalorder %s30, 1
          %s247 = scalar_select %p246, %s30, 1
          %s248 = smul.addr %s245, 2
          %s249 = sadd.s32 %s247, %s248
          %s250 = smul.addr %s249, 4
          %s251 = scalar_lea.vmem %s0, %s250
        $region28: #{tpu_custom_call.1} parent=23 // pred_fallthru
          _
      $region24: #{tpu_custom_call.1} parent=5 // pred_fallthru
        _
      %p252 = scmp.le.s32.totalorder 1, %s22
      %p253 = scmp.lt.s32.totalorder %s22, 5
      %p254 = pnand %p252, %p253
      %p255 = pneg %p254
      // Predicated region
      $region29: #{tpu_custom_call.1} parent=5 // pred_check
        _
      $region30: #{tpu_custom_call.1} parent=5 // pred_check_branch
        %257 = sbr.rel (%p254) target = $region32
      $region31: #{tpu_custom_call.1} parent=5 // pred_region
        %s258 = ssub.s32 %s22, 1
        %p259 = scmp.lt.s32.totalorder %s31, 1
        %s260 = scalar_select %p259, %s31, 1
        %p261 = scmp.lt.s32.totalorder %s32, 1
        %s262 = scalar_select %p261, %s32, 1
        %s263 = smul.addr %s260, 2
        %s264 = sadd.s32 %s262, %s263
        %s265 = smul.addr %s264, 4
        %s266 = scalar_lea.vmem %s0, %s265
        %p267 = pneg %p62
        %p268 = pneg %p59
        %p269 = pneg %p83
        %p270 = pneg %p80
        %p271 = pneg %p104
        %p272 = pneg %p101
        %p273 = pneg %p132
        %p274 = pneg %p129
        %s275 = sand.u32 %s119, 1
        %s276 = scalar_lea.sflag [#allocation3], %s275
        %s277 = sand.u32 %s119, 1
        %s278 = smul.addr %s277, 4
        %s279 = scalar_lea.vmem [#allocation2], %s278
        %p280 = pneg %p160
        %p281 = pneg %p157
        %s282 = sand.u32 %s27, 1
        %s283 = scalar_lea.sflag [#allocation5], %s282
        %s284 = sand.u32 %s147, 1
        %s285 = scalar_lea.vmem [#allocation4], %s284
        %p286 = pneg %p188
        %p287 = pneg %p185
        %s288 = sand.u32 %s27, 1
        %s289 = scalar_lea.sflag [#allocation5], %s288
        %s290 = sand.u32 %s175, 1
        %s291 = scalar_lea.vmem [#allocation6], %s290
        %p292 = pneg %p216
        %p293 = pneg %p213
        %s294 = sand.u32 %s203, 1
        %s295 = scalar_lea.sflag [#allocation8], %s294
        %s296 = sand.u32 %s203, 1
        %s297 = smul.addr %s296, 128
        %s298 = scalar_lea.vmem [#allocation7], %s297
        %p299 = scmp.lt.s32.totalorder %s31, 1
        %s300 = scalar_select %p299, %s31, 1
        %p301 = scmp.lt.s32.totalorder %s32, 1
        %s302 = scalar_select %p301, %s32, 1
        %s303 = smul.addr %s300, 2
        %s304 = sadd.s32 %s302, %s303
        %s305 = smul.addr %s304, 4
        %s306 = scalar_lea.vmem %s0, %s305
        %s307 = smul.u32 16, %s32
        %v308 = vld [vmem:[%s306] sm:$0xf]
        %v309 = vld [vmem:[%s2] sm:$0xff]
        %v310 = vld [vmem:[%s2 + $0x8] sm:$0xff]
        %v311 = vld [vmem:[%s2 + $0x10] sm:$0xff]
        %v312 = vld [vmem:[%s2 + $0x18] sm:$0xff]
        %v313 = vld [vmem:[%s2 + $0x20] sm:$0xff]
        %v314 = vld [vmem:[%s2 + $0x28] sm:$0xff]
        %v315 = vld [vmem:[%s2 + $0x30] sm:$0xff]
        %v316 = vld [vmem:[%s2 + $0x38] sm:$0xff]
        %v317 = vld [vmem:[%s2 + $0x40] sm:$0xff]
        %v318 = vld [vmem:[%s2 + $0x48] sm:$0xff]
        %v319 = vld [vmem:[%s2 + $0x50] sm:$0xff]
        %v320 = vld [vmem:[%s2 + $0x58] sm:$0xff]
        %v321 = vld [vmem:[%s2 + $0x60] sm:$0xff]
        %v322 = vld [vmem:[%s2 + $0x68] sm:$0xff]
        %v323 = vld [vmem:[%s2 + $0x70] sm:$0xff]
        %v324 = vld [vmem:[%s2 + $0x78] sm:$0xff]
        %v325 = vld [vmem:[%s1] sm:$0xff]
        %v326 = vld [vmem:[%s1 + $0x8] sm:$0xff]
        %v327 = vld [vmem:[%s1 + $0x10] sm:$0xff]
        %v328 = vld [vmem:[%s1 + $0x18] sm:$0xff]
        %v329 = vld [vmem:[%s1 + $0x20] sm:$0xff]
        %v330 = vld [vmem:[%s1 + $0x28] sm:$0xff]
        %v331 = vld [vmem:[%s1 + $0x30] sm:$0xff]
        %v332 = vld [vmem:[%s1 + $0x38] sm:$0xff]
        %v333 = vld [vmem:[%s1 + $0x40] sm:$0xff]
        %v334 = vld [vmem:[%s1 + $0x48] sm:$0xff]
        %v335 = vld [vmem:[%s1 + $0x50] sm:$0xff]
        %v336 = vld [vmem:[%s1 + $0x58] sm:$0xff]
        %v337 = vld [vmem:[%s1 + $0x60] sm:$0xff]
        %v338 = vld [vmem:[%s1 + $0x68] sm:$0xff]
        %v339 = vld [vmem:[%s1 + $0x70] sm:$0xff]
        %v340 = vld [vmem:[%s1 + $0x78] sm:$0xff]
        %vm341 = vcmask 31744
        %v343 = vsel %vm341, %v309, 0
        %v346 = vsel %vm341, %v310, 0
        %v349 = vsel %vm341, %v311, 0
        %v352 = vsel %vm341, %v312, 0
        %v355 = vsel %vm341, %v313, 0
        %v358 = vsel %vm341, %v314, 0
        %v361 = vsel %vm341, %v315, 0
        %v364 = vsel %vm341, %v316, 0
        %v367 = vsel %vm341, %v317, 0
        %v370 = vsel %vm341, %v318, 0
        %v373 = vsel %vm341, %v319, 0
        %v376 = vsel %vm341, %v320, 0
        %v379 = vsel %vm341, %v321, 0
        %v382 = vsel %vm341, %v322, 0
        %v385 = vsel %vm341, %v323, 0
        %v388 = vsel %vm341, %v324, 0
        %vm390 = vcmask 1043456
        %v392 = vsel %vm390, %v308, 0
        %394 = vmatpush.msra.mxu0 0.0
        %395 = vmatpush.msra.mxu0 0.0
        %396 = vmatpush.msra.mxu0 0.0
        %397 = vmatpush.msra.mxu0 0.0
        %398 = vmatpush.msra.mxu0 0.0
        %399 = vmatpush.msra.mxu0 0.0
        %400 = vmatpush.msra.mxu0 0.0
        %401 = vmatpush.msra.mxu0 0.0
        %402 = vmatpush.msra.mxu0 0.0
        %403 = vmatpush.msra.mxu0 0.0
        %404 = vmatpush.msra.mxu0 0.0
        %405 = vmatpush.msra.mxu0 0.0
        %406 = vmatpush.msra.mxu0 0.0
        %407 = vmatpush.msra.mxu0 0.0
        %408 = vmatpush.msra.mxu0 0.0
        %409 = vmatpush.msra.mxu0 %v392
        %410 = vmatmul.f32.gmra.mxu0 %v343
        %v411 = vpop.f32.mrf.mxu0
        %v412 = vadd.f32 0.0, %v411
        %413 = vmatmul.f32.gmra.mxu0 %v346
        %v414 = vpop.f32.mrf.mxu0
        %v415 = vadd.f32 0.0, %v414
        %416 = vmatmul.f32.gmra.mxu0 %v349
        %v417 = vpop.f32.mrf.mxu0
        %v418 = vadd.f32 0.0, %v417
        %419 = vmatmul.f32.gmra.mxu0 %v352
        %v420 = vpop.f32.mrf.mxu0
        %v421 = vadd.f32 0.0, %v420
        %422 = vmatmul.f32.gmra.mxu0 %v355
        %v423 = vpop.f32.mrf.mxu0
        %v424 = vadd.f32 0.0, %v423
        %425 = vmatmul.f32.gmra.mxu0 %v358
        %v426 = vpop.f32.mrf.mxu0
        %v427 = vadd.f32 0.0, %v426
        %428 = vmatmul.f32.gmra.mxu0 %v361
        %v429 = vpop.f32.mrf.mxu0
        %v430 = vadd.f32 0.0, %v429
        %431 = vmatmul.f32.gmra.mxu0 %v364
        %v432 = vpop.f32.mrf.mxu0
        %v433 = vadd.f32 0.0, %v432
        %434 = vmatmul.f32.gmra.mxu0 %v367
        %v435 = vpop.f32.mrf.mxu0
        %v436 = vadd.f32 0.0, %v435
        %437 = vmatmul.f32.gmra.mxu0 %v370
        %v438 = vpop.f32.mrf.mxu0
        %v439 = vadd.f32 0.0, %v438
        %440 = vmatmul.f32.gmra.mxu0 %v373
        %v441 = vpop.f32.mrf.mxu0
        %v442 = vadd.f32 0.0, %v441
        %443 = vmatmul.f32.gmra.mxu0 %v376
        %v444 = vpop.f32.mrf.mxu0
        %v445 = vadd.f32 0.0, %v444
        %446 = vmatmul.f32.gmra.mxu0 %v379
        %v447 = vpop.f32.mrf.mxu0
        %v448 = vadd.f32 0.0, %v447
        %449 = vmatmul.f32.gmra.mxu0 %v382
        %v450 = vpop.f32.mrf.mxu0
        %v451 = vadd.f32 0.0, %v450
        %452 = vmatmul.f32.gmra.mxu0 %v385
        %v453 = vpop.f32.mrf.mxu0
        %v454 = vadd.f32 0.0, %v453
        %455 = vmatmul.f32.gmra.mxu0 %v388
        %v456 = vpop.f32.mrf.mxu0
        %v457 = vadd.f32 0.0, %v456
        %458 = vdwg.mxu0
        %460 = vset.pattern.permute.xlu0 0
        %461 = vperm.xlu0 %460, %v325
        %v462 = vpop.permute.xlu0 %461
        %465 = vset.pattern.permute.xlu0 0
        %466 = vperm.xlu0 %465, %v326
        %v467 = vpop.permute.xlu0 %466
        %470 = vset.pattern.permute.xlu0 0
        %471 = vperm.xlu0 %470, %v327
        %v472 = vpop.permute.xlu0 %471
        %475 = vset.pattern.permute.xlu0 0
        %476 = vperm.xlu0 %475, %v328
        %v477 = vpop.permute.xlu0 %476
        %480 = vset.pattern.permute.xlu0 0
        %481 = vperm.xlu0 %480, %v329
        %v482 = vpop.permute.xlu0 %481
        %485 = vset.pattern.permute.xlu0 0
        %486 = vperm.xlu0 %485, %v330
        %v487 = vpop.permute.xlu0 %486
        %490 = vset.pattern.permute.xlu0 0
        %491 = vperm.xlu0 %490, %v331
        %v492 = vpop.permute.xlu0 %491
        %495 = vset.pattern.permute.xlu0 0
        %496 = vperm.xlu0 %495, %v332
        %v497 = vpop.permute.xlu0 %496
        %500 = vset.pattern.permute.xlu0 0
        %501 = vperm.xlu0 %500, %v333
        %v502 = vpop.permute.xlu0 %501
        %505 = vset.pattern.permute.xlu0 0
        %506 = vperm.xlu0 %505, %v334
        %v507 = vpop.permute.xlu0 %506
        %510 = vset.pattern.permute.xlu0 0
        %511 = vperm.xlu0 %510, %v335
        %v512 = vpop.permute.xlu0 %511
        %515 = vset.pattern.permute.xlu0 0
        %516 = vperm.xlu0 %515, %v336
        %v517 = vpop.permute.xlu0 %516
        %520 = vset.pattern.permute.xlu0 0
        %521 = vperm.xlu0 %520, %v337
        %v522 = vpop.permute.xlu0 %521
        %525 = vset.pattern.permute.xlu0 0
        %526 = vperm.xlu0 %525, %v338
        %v527 = vpop.permute.xlu0 %526
        %530 = vset.pattern.permute.xlu0 0
        %531 = vperm.xlu0 %530, %v339
        %v532 = vpop.permute.xlu0 %531
        %535 = vset.pattern.permute.xlu0 0
        %536 = vperm.xlu0 %535, %v340
        %v537 = vpop.permute.xlu0 %536
        %v539 = vsub.f32 %v462, %v412
        %v540 = vsub.f32 %v467, %v415
        %v541 = vsub.f32 %v472, %v418
        %v542 = vsub.f32 %v477, %v421
        %v543 = vsub.f32 %v482, %v424
        %v544 = vsub.f32 %v487, %v427
        %v545 = vsub.f32 %v492, %v430
        %v546 = vsub.f32 %v497, %v433
        %v547 = vsub.f32 %v502, %v436
        %v548 = vsub.f32 %v507, %v439
        %v549 = vsub.f32 %v512, %v442
        %v550 = vsub.f32 %v517, %v445
        %v551 = vsub.f32 %v522, %v448
        %v552 = vsub.f32 %v527, %v451
        %v553 = vsub.f32 %v532, %v454
        %v554 = vsub.f32 %v537, %v457
        %v555 = vmin.f32 %v539, %v543
        %v556 = vmin.f32 %v540, %v544
        %v557 = vmin.f32 %v541, %v545
        %v558 = vmin.f32 %v542, %v546
        %v559 = vmin.f32 %v555, %v547
        %v560 = vmin.f32 %v556, %v548
        %v561 = vmin.f32 %v557, %v549
        %v562 = vmin.f32 %v558, %v550
        %v563 = vmin.f32 %v559, %v551
        %v564 = vmin.f32 %v560, %v552
        %v565 = vmin.f32 %v561, %v553
        %v566 = vmin.f32 %v562, %v554
        %v567 = vmin.f32 %v563, %v564
        %v568 = vmin.f32 %v565, %v566
        %v569 = vmin.f32 %v567, %v568
        %v570 = vrot.slane %v569, 4
        %v571 = vmin.f32 %v569, %v570
        %v572 = vrot.slane %v571, 2
        %v573 = vmin.f32 %v571, %v572
        %v574 = vrot.slane %v573, 1
        %v575 = vmin.f32 %v573, %v574
        %v576 = vlaneseq
        %v577 = vshrl.u32 %v576, 7
        %v578 = vadd.s32 %v577, 8
        %v579 = vadd.s32 %v577, 16
        %v580 = vadd.s32 %v577, 24
        %v581 = vadd.s32 %v577, 32
        %v582 = vadd.s32 %v577, 40
        %v583 = vadd.s32 %v577, 48
        %v584 = vadd.s32 %v577, 56
        %v585 = vadd.s32 %v577, 64
        %v586 = vadd.s32 %v577, 72
        %v587 = vadd.s32 %v577, 80
        %v588 = vadd.s32 %v577, 88
        %v589 = vadd.s32 %v577, 96
        %v590 = vadd.s32 %v577, 104
        %v591 = vadd.s32 %v577, 112
        %v592 = vadd.s32 %v577, 120
        %vm593 = vcmp.le.f32.partialorder %v539, %v575
        %vm594 = vcmp.le.f32.partialorder %v540, %v575
        %vm595 = vcmp.le.f32.partialorder %v541, %v575
        %vm596 = vcmp.le.f32.partialorder %v542, %v575
        %vm597 = vcmp.le.f32.partialorder %v543, %v575
        %vm598 = vcmp.le.f32.partialorder %v544, %v575
        %vm599 = vcmp.le.f32.partialorder %v545, %v575
        %vm600 = vcmp.le.f32.partialorder %v546, %v575
        %vm601 = vcmp.le.f32.partialorder %v547, %v575
        %vm602 = vcmp.le.f32.partialorder %v548, %v575
        %vm603 = vcmp.le.f32.partialorder %v549, %v575
        %vm604 = vcmp.le.f32.partialorder %v550, %v575
        %vm605 = vcmp.le.f32.partialorder %v551, %v575
        %vm606 = vcmp.le.f32.partialorder %v552, %v575
        %vm607 = vcmp.le.f32.partialorder %v553, %v575
        %vm608 = vcmp.le.f32.partialorder %v554, %v575
        %v609 = vsel %vm593, %v577, 128
        %v610 = vsel %vm594, %v578, 128
        %v611 = vsel %vm595, %v579, 128
        %v612 = vsel %vm596, %v580, 128
        %v613 = vsel %vm597, %v581, 128
        %v614 = vsel %vm598, %v582, 128
        %v615 = vsel %vm599, %v583, 128
        %v616 = vsel %vm600, %v584, 128
        %v617 = vsel %vm601, %v585, 128
        %v618 = vsel %vm602, %v586, 128
        %v619 = vsel %vm603, %v587, 128
        %v620 = vsel %vm604, %v588, 128
        %v621 = vsel %vm605, %v589, 128
        %v622 = vsel %vm606, %v590, 128
        %v623 = vsel %vm607, %v591, 128
        %v624 = vsel %vm608, %v592, 128
        %vm625 = vcmp.lt.s32.totalorder %v609, %v613
        %v626 = vsel %vm625, %v609, %v613
        %vm627 = vcmp.lt.s32.totalorder %v610, %v614
        %v628 = vsel %vm627, %v610, %v614
        %vm629 = vcmp.lt.s32.totalorder %v611, %v615
        %v630 = vsel %vm629, %v611, %v615
        %vm631 = vcmp.lt.s32.totalorder %v612, %v616
        %v632 = vsel %vm631, %v612, %v616
        %vm633 = vcmp.lt.s32.totalorder %v626, %v617
        %v634 = vsel %vm633, %v626, %v617
        %vm635 = vcmp.lt.s32.totalorder %v628, %v618
        %v636 = vsel %vm635, %v628, %v618
        %vm637 = vcmp.lt.s32.totalorder %v630, %v619
        %v638 = vsel %vm637, %v630, %v619
        %vm639 = vcmp.lt.s32.totalorder %v632, %v620
        %v640 = vsel %vm639, %v632, %v620
        %vm641 = vcmp.lt.s32.totalorder %v634, %v621
        %v642 = vsel %vm641, %v634, %v621
        %vm643 = vcmp.lt.s32.totalorder %v636, %v622
        %v644 = vsel %vm643, %v636, %v622
        %vm645 = vcmp.lt.s32.totalorder %v638, %v623
        %v646 = vsel %vm645, %v638, %v623
        %vm647 = vcmp.lt.s32.totalorder %v640, %v624
        %v648 = vsel %vm647, %v640, %v624
        %vm649 = vcmp.lt.s32.totalorder %v642, %v644
        %v650 = vsel %vm649, %v642, %v644
        %vm651 = vcmp.lt.s32.totalorder %v646, %v648
        %v652 = vsel %vm651, %v646, %v648
        %vm653 = vcmp.lt.s32.totalorder %v650, %v652
        %v654 = vsel %vm653, %v650, %v652
        %v655 = vrot.slane %v654, 4
        %vm656 = vcmp.lt.s32.totalorder %v654, %v655
        %v657 = vsel %vm656, %v654, %v655
        %v658 = vrot.slane %v657, 2
        %vm659 = vcmp.lt.s32.totalorder %v657, %v658
        %v660 = vsel %vm659, %v657, %v658
        %v661 = vrot.slane %v660, 1
        %vm662 = vcmp.lt.s32.totalorder %v660, %v661
        %v663 = vsel %vm662, %v660, %v661
        %vm664 = vcmp.eq.s32.totalorder %v577, %v663
        %vm665 = vcmp.eq.s32.totalorder %v578, %v663
        %vm666 = vcmp.eq.s32.totalorder %v579, %v663
        %vm667 = vcmp.eq.s32.totalorder %v580, %v663
        %vm668 = vcmp.eq.s32.totalorder %v581, %v663
        %vm669 = vcmp.eq.s32.totalorder %v582, %v663
        %vm670 = vcmp.eq.s32.totalorder %v583, %v663
        %vm671 = vcmp.eq.s32.totalorder %v584, %v663
        %vm672 = vcmp.eq.s32.totalorder %v585, %v663
        %vm673 = vcmp.eq.s32.totalorder %v586, %v663
        %vm674 = vcmp.eq.s32.totalorder %v587, %v663
        %vm675 = vcmp.eq.s32.totalorder %v588, %v663
        %vm676 = vcmp.eq.s32.totalorder %v589, %v663
        %vm677 = vcmp.eq.s32.totalorder %v590, %v663
        %vm678 = vcmp.eq.s32.totalorder %v591, %v663
        %vm679 = vcmp.eq.s32.totalorder %v592, %v663
        %v680 = vsel %vm664, 1.0, 0.0
        %v681 = vsel %vm665, 1.0, 0.0
        %v682 = vsel %vm666, 1.0, 0.0
        %v683 = vsel %vm667, 1.0, 0.0
        %v684 = vsel %vm668, 1.0, 0.0
        %v685 = vsel %vm669, 1.0, 0.0
        %v686 = vsel %vm670, 1.0, 0.0
        %v687 = vsel %vm671, 1.0, 0.0
        %v688 = vsel %vm672, 1.0, 0.0
        %v689 = vsel %vm673, 1.0, 0.0
        %v690 = vsel %vm674, 1.0, 0.0
        %v691 = vsel %vm675, 1.0, 0.0
        %v692 = vsel %vm676, 1.0, 0.0
        %v693 = vsel %vm677, 1.0, 0.0
        %v694 = vsel %vm678, 1.0, 0.0
        %v695 = vsel %vm679, 1.0, 0.0
        %696 = vxpose.xlu0.b32.start [1/16] %v309, 128
        %697 = vxpose.xlu0.b32.cont [2/16] %v310, 128
        %698 = vxpose.xlu0.b32.cont [3/16] %v311, 128
        %699 = vxpose.xlu0.b32.cont [4/16] %v312, 128
        %700 = vxpose.xlu0.b32.cont [5/16] %v313, 128
        %701 = vxpose.xlu0.b32.cont [6/16] %v314, 128
        %702 = vxpose.xlu0.b32.cont [7/16] %v315, 128
        %703 = vxpose.xlu0.b32.cont [8/16] %v316, 128
        %704 = vxpose.xlu0.b32.cont [9/16] %v317, 128
        %705 = vxpose.xlu0.b32.cont [10/16] %v318, 128
        %706 = vxpose.xlu0.b32.cont [11/16] %v319, 128
        %707 = vxpose.xlu0.b32.cont [12/16] %v320, 128
        %708 = vxpose.xlu0.b32.cont [13/16] %v321, 128
        %709 = vxpose.xlu0.b32.cont [14/16] %v322, 128
        %710 = vxpose.xlu0.b32.cont [15/16] %v323, 128
        %711 = vxpose.xlu0.b32.end [16/16] %v324, 128
        %v712 = vpop.trf.xlu0
        %v713 = vpop.trf.xlu0
        %v714 = vpop.trf.xlu0
        %v715 = vpop.trf.xlu0
        %v716 = vpop.trf.xlu0
        %v717 = vpop.trf.xlu0
        %v718 = vpop.trf.xlu0
        %v719 = vpop.trf.xlu0
        %v720 = vpop.trf.xlu0
        %v721 = vpop.trf.xlu0
        %v722 = vpop.trf.xlu0
        %v723 = vpop.trf.xlu0
        %v724 = vpop.trf.xlu0
        %v725 = vpop.trf.xlu0
        %v726 = vpop.trf.xlu0
        %v727 = vpop.trf.xlu0
        %728 = vmatpush.msra.mxu0 %v695
        %729 = vmatpush.msra.mxu0 %v694
        %730 = vmatpush.msra.mxu0 %v693
        %731 = vmatpush.msra.mxu0 %v692
        %732 = vmatpush.msra.mxu0 %v691
        %733 = vmatpush.msra.mxu0 %v690
        %734 = vmatpush.msra.mxu0 %v689
        %735 = vmatpush.msra.mxu0 %v688
        %736 = vmatpush.msra.mxu0 %v687
        %737 = vmatpush.msra.mxu0 %v686
        %738 = vmatpush.msra.mxu0 %v685
        %739 = vmatpush.msra.mxu0 %v684
        %740 = vmatpush.msra.mxu0 %v683
        %741 = vmatpush.msra.mxu0 %v682
        %742 = vmatpush.msra.mxu0 %v681
        %743 = vmatpush.msra.mxu0 %v680
        %744 = vmatmul.f32.gmra.mxu0 %v712
        %v745 = vpop.f32.mrf.mxu0
        %v746 = vadd.f32 0.0, %v745
        %747 = vdwg.mxu0
        %v748 = vsub.f32 %v746, %v308
        %749 = vst [vmem:[%s279] sm:$0xf] %v746
        %750 = vst [vmem:[%s285] sm:$0x1] %v663
        %v751 = vmul.f32 %v748, %v748
        %v752 = vsel %vm390, %v751, 0.0
        %v753 = vrot.slane %v752, 4
        %v754 = vadd.f32 %v752, %v753
        %v755 = vrot.slane %v754, 2
        %v756 = vadd.f32 %v754, %v755
        %v757 = vrot.slane %v756, 1
        %v758 = vadd.f32 %v756, %v757
        %759 = vst [vmem:[%s291] sm:$0x1] %v758
        %v760 = vmul.f32 %v308, %v308
        %v761 = vsel %vm390, %v760, 0.0
        %v762 = vrot.slane %v761, 4
        %v763 = vadd.f32 %v761, %v762
        %v764 = vrot.slane %v763, 2
        %v765 = vadd.f32 %v763, %v764
        %v766 = vrot.slane %v765, 1
        %v767 = vadd.f32 %v765, %v766
        %v768 = vmul.f32 %v539, 2.0
        %v769 = vmul.f32 %v540, 2.0
        %v770 = vmul.f32 %v541, 2.0
        %v771 = vmul.f32 %v542, 2.0
        %v772 = vmul.f32 %v543, 2.0
        %v773 = vmul.f32 %v544, 2.0
        %v774 = vmul.f32 %v545, 2.0
        %v775 = vmul.f32 %v546, 2.0
        %v776 = vmul.f32 %v547, 2.0
        %v777 = vmul.f32 %v548, 2.0
        %v778 = vmul.f32 %v549, 2.0
        %v779 = vmul.f32 %v550, 2.0
        %v780 = vmul.f32 %v551, 2.0
        %v781 = vmul.f32 %v552, 2.0
        %v782 = vmul.f32 %v553, 2.0
        %v783 = vmul.f32 %v554, 2.0
        %v784 = vadd.f32 %v767, %v768
        %v785 = vadd.f32 %v767, %v769
        %v786 = vadd.f32 %v767, %v770
        %v787 = vadd.f32 %v767, %v771
        %v788 = vadd.f32 %v767, %v772
        %v789 = vadd.f32 %v767, %v773
        %v790 = vadd.f32 %v767, %v774
        %v791 = vadd.f32 %v767, %v775
        %v792 = vadd.f32 %v767, %v776
        %v793 = vadd.f32 %v767, %v777
        %v794 = vadd.f32 %v767, %v778
        %v795 = vadd.f32 %v767, %v779
        %v796 = vadd.f32 %v767, %v780
        %v797 = vadd.f32 %v767, %v781
        %v798 = vadd.f32 %v767, %v782
        %v799 = vadd.f32 %v767, %v783
        %800 = vxpose.xlu0.b32.start [1/16] %v784, 128
        %801 = vxpose.xlu0.b32.cont [2/16] %v785, 128
        %802 = vxpose.xlu0.b32.cont [3/16] %v786, 128
        %803 = vxpose.xlu0.b32.cont [4/16] %v787, 128
        %804 = vxpose.xlu0.b32.cont [5/16] %v788, 128
        %805 = vxpose.xlu0.b32.cont [6/16] %v789, 128
        %806 = vxpose.xlu0.b32.cont [7/16] %v790, 128
        %807 = vxpose.xlu0.b32.cont [8/16] %v791, 128
        %808 = vxpose.xlu0.b32.cont [9/16] %v792, 128
        %809 = vxpose.xlu0.b32.cont [10/16] %v793, 128
        %810 = vxpose.xlu0.b32.cont [11/16] %v794, 128
        %811 = vxpose.xlu0.b32.cont [12/16] %v795, 128
        %812 = vxpose.xlu0.b32.cont [13/16] %v796, 128
        %813 = vxpose.xlu0.b32.cont [14/16] %v797, 128
        %814 = vxpose.xlu0.b32.cont [15/16] %v798, 128
        %815 = vxpose.xlu0.b32.end [16/16] %v799, 128
        %v816 = vpop.trf.xlu0
        %v817 = vpop.trf.xlu0
        %v818 = vpop.trf.xlu0
        %v819 = vpop.trf.xlu0
        %v820 = vpop.trf.xlu0
        %v821 = vpop.trf.xlu0
        %v822 = vpop.trf.xlu0
        %v823 = vpop.trf.xlu0
        %v824 = vpop.trf.xlu0
        %v825 = vpop.trf.xlu0
        %v826 = vpop.trf.xlu0
        %v827 = vpop.trf.xlu0
        %v828 = vpop.trf.xlu0
        %v829 = vpop.trf.xlu0
        %v830 = vpop.trf.xlu0
        %v831 = vpop.trf.xlu0
        %832 = vst [vmem:[%s298] sm:$0xff] %v816
        %833 = vst [vmem:[%s298 + $0x8] sm:$0xff] %v817
        %834 = vst [vmem:[%s298 + $0x10] sm:$0xff] %v818
        %835 = vst [vmem:[%s298 + $0x18] sm:$0xff] %v819
        %836 = vst [vmem:[%s298 + $0x20] sm:$0xff] %v820
        %837 = vst [vmem:[%s298 + $0x28] sm:$0xff] %v821
        %838 = vst [vmem:[%s298 + $0x30] sm:$0xff] %v822
        %839 = vst [vmem:[%s298 + $0x38] sm:$0xff] %v823
        %840 = vst [vmem:[%s298 + $0x40] sm:$0xff] %v824
        %841 = vst [vmem:[%s298 + $0x48] sm:$0xff] %v825
        %842 = vst [vmem:[%s298 + $0x50] sm:$0xff] %v826
        %843 = vst [vmem:[%s298 + $0x58] sm:$0xff] %v827
        %844 = vst [vmem:[%s298 + $0x60] sm:$0xff] %v828
        %845 = vst [vmem:[%s298 + $0x68] sm:$0xff] %v829
        %846 = vst [vmem:[%s298 + $0x70] sm:$0xff] %v830
        %847 = vst [vmem:[%s298 + $0x78] sm:$0xff] %v831
        %s848 = sand.u32 %s119, 1
        %s849 = scalar_lea.sflag [#allocation3], %s848
        %s850 = sand.u32 %s119, 1
        %s851 = smul.addr %s850, 4
        %s852 = scalar_lea.vmem [#allocation2], %s851
        %s853 = sand.u32 %s27, 1
        %s854 = scalar_lea.sflag [#allocation5], %s853
        %s855 = sand.u32 %s147, 1
        %s856 = scalar_lea.vmem [#allocation4], %s855
        %s857 = sand.u32 %s27, 1
        %s858 = scalar_lea.sflag [#allocation5], %s857
        %s859 = sand.u32 %s175, 1
        %s860 = scalar_lea.vmem [#allocation6], %s859
        %s861 = sand.u32 %s203, 1
        %s862 = scalar_lea.sflag [#allocation8], %s861
        %s863 = sand.u32 %s203, 1
        %s864 = smul.addr %s863, 128
        %s865 = scalar_lea.vmem [#allocation7], %s864
        // Predicated region
        $region33: #{tpu_custom_call.1} parent=31 // pred_check
          %p866 = pneg %p129
        $region34: #{tpu_custom_call.1} parent=31 // pred_check_branch
          %868 = sbr.rel (%p866) target = $region36
        $region35: #{tpu_custom_call.1} parent=31 // pred_region
          %870 = vsyncadd %s849, 0
          %s871 = smul.addr %s31, 2
          %s872 = sadd.s32 %s32, %s871
          %s873 = smul.addr %s872, 4
          %s874 = scalar_lea.hbm %s3, %s873
          %s876 = sshll.u32 %s852, 4
          %s877 = int_to_ptr.vmem [resolvable:$true] %s876
          %s878 = sshll.u32 %s874, 4
          %s879 = int_to_ptr.hbm [resolvable:$true] %s878
          %881 = dma.vmem_to_hbm [thread:$0]  %s877, 64, %s879, %s849
        $region36: #{tpu_custom_call.1} parent=31 // pred_fallthru
          _
        // Predicated region
        $region37: #{tpu_custom_call.1} parent=31 // pred_check
          %p882 = pneg %p157
        $region38: #{tpu_custom_call.1} parent=31 // pred_check_branch
          %884 = sbr.rel (%p882) target = $region40
        $region39: #{tpu_custom_call.1} parent=31 // pred_region
          %886 = vsyncadd %s854, 0
          %s887 = smul.addr %s31, 2
          %s888 = sadd.s32 %s32, %s887
          %s889 = scalar_lea.hbm %s4, %s888
          %s891 = sshll.u32 %s856, 4
          %s892 = int_to_ptr.vmem [resolvable:$true] %s891
          %s893 = sshll.u32 %s889, 4
          %s894 = int_to_ptr.hbm [resolvable:$true] %s893
          %896 = dma.vmem_to_hbm [thread:$0]  %s892, 16, %s894, %s854
        $region40: #{tpu_custom_call.1} parent=31 // pred_fallthru
          _
        // Predicated region
        $region41: #{tpu_custom_call.1} parent=31 // pred_check
          %p897 = pneg %p185
        $region42: #{tpu_custom_call.1} parent=31 // pred_check_branch
          %899 = sbr.rel (%p897) target = $region44
        $region43: #{tpu_custom_call.1} parent=31 // pred_region
          %901 = vsyncadd %s858, 0
          %s902 = smul.addr %s31, 2
          %s903 = sadd.s32 %s32, %s902
          %s904 = scalar_lea.hbm %s5, %s903
          %s906 = sshll.u32 %s860, 4
          %s907 = int_to_ptr.vmem [resolvable:$true] %s906
          %s908 = sshll.u32 %s904, 4
          %s909 = int_to_ptr.hbm [resolvable:$true] %s908
          %911 = dma.vmem_to_hbm [thread:$0]  %s907, 16, %s909, %s858
        $region44: #{tpu_custom_call.1} parent=31 // pred_fallthru
          _
        // Predicated region
        $region45: #{tpu_custom_call.1} parent=31 // pred_check
          %p912 = pneg %p213
        $region46: #{tpu_custom_call.1} parent=31 // pred_check_branch
          %914 = sbr.rel (%p912) target = $region48
        $region47: #{tpu_custom_call.1} parent=31 // pred_region
          %s915 = smul.u32 16, %s32
          %917 = vsyncadd %s862, 0
          %s918 = smul.addr %s31, 32
          %s919 = sadd.s32 %s915, %s918
          %s920 = smul.addr %s919, 8
          %s921 = scalar_lea.hbm %s6, %s920
          %s922 = sshll.u32 %s865, 4
          %s923 = int_to_ptr.vmem [resolvable:$true] %s922
          %s924 = sshll.u32 %s921, 4
          %s925 = int_to_ptr.hbm [resolvable:$true] %s924
          %930 = dma.vmem_to_hbm [thread:$0]  %s923, 2048, %s925, %s862, 128, 128, 8
        $region48: #{tpu_custom_call.1} parent=31 // pred_fallthru
          _
      $region32: #{tpu_custom_call.1} parent=5 // pred_fallthru
        _
      %p931 = scmp.le.s32.totalorder 2, %s22
      // Predicated region
      $region49: #{tpu_custom_call.1} parent=5 // pred_check
        %p932 = pneg %p931
      $region50: #{tpu_custom_call.1} parent=5 // pred_check_branch
        %934 = sbr.rel (%p932) target = $region52
      $region51: #{tpu_custom_call.1} parent=5 // pred_region
        %s935 = ssub.s32 %s22, 2
        // Predicated region
        $region53: #{tpu_custom_call.1} parent=51 // pred_check
          %p936 = pneg %p135
        $region54: #{tpu_custom_call.1} parent=51 // pred_check_branch
          %938 = sbr.rel (%p936) target = $region56
        $region55: #{tpu_custom_call.1} parent=51 // pred_region
          %s939 = sand.u32 %s120, 1
          %s940 = scalar_lea.sflag [#allocation3], %s939
          %s941 = sand.u32 %s120, 1
          %s942 = smul.addr %s941, 4
          %s943 = scalar_lea.vmem [#allocation2], %s942
          %945 = dma.done %s940, 64
        $region56: #{tpu_custom_call.1} parent=51 // pred_fallthru
          _
        // Predicated region
        $region57: #{tpu_custom_call.1} parent=51 // pred_check
          %p946 = pneg %p163
        $region58: #{tpu_custom_call.1} parent=51 // pred_check_branch
          %948 = sbr.rel (%p946) target = $region60
        $region59: #{tpu_custom_call.1} parent=51 // pred_region
          %s949 = sand.u32 %s28, 1
          %s950 = scalar_lea.sflag [#allocation5], %s949
          %s951 = sand.u32 %s148, 1
          %s952 = scalar_lea.vmem [#allocation4], %s951
          %954 = dma.done %s950, 16
        $region60: #{tpu_custom_call.1} parent=51 // pred_fallthru
          _
        // Predicated region
        $region61: #{tpu_custom_call.1} parent=51 // pred_check
          %p955 = pneg %p191
        $region62: #{tpu_custom_call.1} parent=51 // pred_check_branch
          %957 = sbr.rel (%p955) target = $region64
        $region63: #{tpu_custom_call.1} parent=51 // pred_region
          %s958 = sand.u32 %s28, 1
          %s959 = scalar_lea.sflag [#allocation5], %s958
          %s960 = sand.u32 %s176, 1
          %s961 = scalar_lea.vmem [#allocation6], %s960
          %963 = dma.done %s959, 16
        $region64: #{tpu_custom_call.1} parent=51 // pred_fallthru
          _
        // Predicated region
        $region65: #{tpu_custom_call.1} parent=51 // pred_check
          %p964 = pneg %p219
        $region66: #{tpu_custom_call.1} parent=51 // pred_check_branch
          %966 = sbr.rel (%p964) target = $region68
        $region67: #{tpu_custom_call.1} parent=51 // pred_region
          %s967 = sand.u32 %s204, 1
          %s968 = scalar_lea.sflag [#allocation8], %s967
          %s969 = sand.u32 %s204, 1
          %s970 = smul.addr %s969, 128
          %s971 = scalar_lea.vmem [#allocation7], %s970
          %973 = dma.done %s968, 2048
        $region68: #{tpu_custom_call.1} parent=51 // pred_fallthru
          _
      $region52: #{tpu_custom_call.1} parent=5 // pred_fallthru
        _
    $region6: #{tpu_custom_call.1} parent=1 // loop_footer
      %s26 = sadd.s32 1, %s22
    $region7: #{tpu_custom_call.1} parent=1 // loop_footer_branch
      %21 = sbr.rel target = $region3
    $region8: #{tpu_custom_call.1} parent=1 // loop_exit
      _
    %974 = vsyncpa [#allocation3], 1
    %s975 = scalar_lea.sflag [#allocation3], 1
    %976 = vsyncpa %s975, 1
    %977 = vsyncpa [#allocation5], 1
    %s978 = scalar_lea.sflag [#allocation5], 1
    %979 = vsyncpa %s978, 1
    %980 = vsyncpa [#allocation8], 1
    %s981 = scalar_lea.sflag [#allocation8], 1
    %982 = vsyncpa %s981, 1

</llo_original>
